<compile_context>
chip_gen: v5e
topology: v5e:2x2
jax: 0.10.0
libtpu: 0.0.40
codegen_flags: <defaults>
</compile_context>

<pallas_src>
import jax
import jax.numpy as jnp
from jax.experimental import pallas as pl
from jax.experimental.pallas import tpu as pltpu


_LANE = 128
_SUBLANE = 8
_MAX_BLOCK_B = 32768


def _cursor_decoder_kernel(x_ref, w1_ref, b1_ref, w2t_ref, b2t_ref, o_ref):
    # Linear(h_dim, 64) + SiLU.  Operands go to the MXU at their native dtype
    # (bf16 straight in); accumulation is f32 via preferred_element_type.
    h = jnp.dot(x_ref[...], w1_ref[...], preferred_element_type=jnp.float32)
    h = h + b1_ref[...].astype(jnp.float32)
    h = h * jax.nn.sigmoid(h)  # SiLU(x) = x * sigmoid(x)

    # Linear(64, 2) + Sigmoid, emitted directly as the transposed, lane-dense
    # (out_dim, block_b) tile: contract the hidden axis of w2^T (out_dim, hidden)
    # against the hidden axis of h (block_b, hidden).  This folds the output
    # transpose into the MXU feed (no per-step XLU transpose of (block_b, 2)).
    y_t = jnp.einsum('oh,bh->ob', w2t_ref[...], h,
                     preferred_element_type=jnp.float32)
    y_t = y_t + b2t_ref[...].astype(jnp.float32)
    o_ref[...] = (jax.nn.sigmoid(y_t) * 255.0).astype(o_ref.dtype)


def _round_up(v, m):
    return ((v + m - 1) // m) * m


def _vmem_footprint_bytes(block_b, H, hidden, out_dim, x_itemsize):
    """Rough per-kernel VMEM footprint (lane/sublane padded, double-buffered)."""
    h_pad = _round_up(H, _LANE)
    hid_pad = _round_up(hidden, _LANE)
    x_tile = 2 * block_b * h_pad * x_itemsize            # double-buffered x tile
    h_tmp = block_b * hid_pad * 4                        # f32 SiLU intermediate
    o_tile = 2 * _round_up(out_dim, _SUBLANE) * block_b * 4  # double-buffered out
    weights = (h_pad * hid_pad + hid_pad * _LANE) * 4 + (1 << 16)
    return x_tile + h_tmp + o_tile + weights


def _pick_block_b(B, requested, min_grid_steps, H, hidden, out_dim, x_itemsize,
                  vmem_budget_bytes=48 << 20):
    """Biggest VMEM-feasible batch tile (amortize ~0.35us/step), multiple of 128
    when tiled, capped only enough to keep >= min_grid_steps grid steps so
    megacore chips can shard the 'parallel' axis."""
    bb = max(_LANE, min(int(requested), _MAX_BLOCK_B))
    while bb > _LANE and _vmem_footprint_bytes(
            bb, H, hidden, out_dim, x_itemsize) > vmem_budget_bytes:
        bb //= 2
    if B <= bb:
        return B  # single grid step; block == full array dims (always legal)
    if min_grid_steps > 1:
        cap = max(_LANE, ((B // max(min_grid_steps, 1)) // _LANE) * _LANE)
        bb = min(bb, cap)
    return max(_LANE, (bb // _LANE) * _LANE)


def _default_min_grid_steps():
    # 2 TensorCores per chip on v4 / v5p / v7x (megacore); 1 on v5e / v6e.
    try:
        kind = jax.devices()[0].device_kind.lower()
    except Exception:
        return 2
    if any(tag in kind for tag in ("v4", "v5p", "v5 p", "v7", "7x")):
        return 2
    return 1


def tty_cursor_decoder(x, w1, b1, w2, b2, *, block_b=8192, min_grid_steps=None,
                       transposed_output=False):
    """x: [B, h_dim] -> [B, 2] float32 (or [2, B] if transposed_output),
    matching TTYCursorDecoder.forward."""
    B, H = x.shape
    hidden = w1.shape[1]   # 64
    out_dim = w2.shape[1]  # 2

    # Normalize parameter layouts (torch-exported biases may be 1-D).
    b1 = jnp.reshape(b1, (1, hidden))
    b2_t = jnp.reshape(b2, (out_dim, 1))
    w2_t = jnp.transpose(w2)  # (out_dim, hidden): kernel emits (out_dim, block_b)

    if min_grid_steps is None:
        min_grid_steps = _default_min_grid_steps()

    x_itemsize = jnp.dtype(x.dtype).itemsize
    block_b = _pick_block_b(B, block_b, min_grid_steps, H, hidden, out_dim,
                            x_itemsize)
    grid = (pl.cdiv(B, block_b),)

    # Scoped-VMEM limit sized to the actual footprint (v5e default is only
    # 16 MiB); clamp to v7x's 64 MiB physical VMEM.
    footprint = _vmem_footprint_bytes(block_b, H, hidden, out_dim, x_itemsize)
    vmem_limit = int(min(max(32 << 20, footprint + footprint // 2), 64 << 20))

    # Advisory cost so XLA schedules neighbouring ops around this small call.
    bytes_accessed = (
        B * H * x_itemsize                       # x read
        + B * out_dim * 4                        # output write (f32)
        + w1.size * jnp.dtype(w1.dtype).itemsize
        + b1.size * jnp.dtype(b1.dtype).itemsize
        + w2.size * jnp.dtype(w2.dtype).itemsize
        + b2.size * jnp.dtype(b2.dtype).itemsize)
    cost = pl.CostEstimate(
        flops=2 * B * (H * hidden + hidden * out_dim),
        transcendentals=B * (hidden + out_dim),  # sigmoids (SiLU + output)
        bytes_accessed=bytes_accessed)

    # TODO(synk): if h_dim stays well below 128, a wrapper-side repack of x to
    # (B*H/128, 128) with a block-diagonal w1 would make the x DMA fully
    # lane-dense (today the (block_b, H<128) tile is lane-padded to 128).
    out_t = pl.pallas_call(
        _cursor_decoder_kernel,
        out_shape=jax.ShapeDtypeStruct((out_dim, B), jnp.float32),  # lane-dense
        grid_spec=pltpu.PrefetchScalarGridSpec(
            num_scalar_prefetch=0,
            grid=grid,
            in_specs=[
                pl.BlockSpec((block_b, H), lambda i: (i, 0)),        # x tile
                pl.BlockSpec((H, hidden), lambda i: (0, 0)),         # w1 (replicated)
                pl.BlockSpec((1, hidden), lambda i: (0, 0)),         # b1
                pl.BlockSpec((out_dim, hidden), lambda i: (0, 0)),   # w2^T
                pl.BlockSpec((out_dim, 1), lambda i: (0, 0)),        # b2^T
            ],
            out_specs=pl.BlockSpec((out_dim, block_b), lambda i: (0, i)),
        ),
        compiler_params=pltpu.CompilerParams(
            dimension_semantics=("parallel",),
            vmem_limit_bytes=vmem_limit),
        cost_estimate=cost,
    )(x, w1, b1, w2_t, b2_t)

    if transposed_output:
        return out_t
    # Transpose back to the module's [B, 2] layout (tiny wrapper-side op).
    return out_t.T


def _reference(x, w1, b1, w2, b2):
    xf = x.astype(jnp.float32)
    h = xf @ w1 + b1.reshape(1, -1)
    h = h * jax.nn.sigmoid(h)
    y = h @ w2 + b2.reshape(1, -1)
    return jax.nn.sigmoid(y) * 255.0


if __name__ == "__main__":
    key = jax.random.PRNGKey(0)
    k_x, k_w1, k_b1, k_w2, k_b2, k_x2 = jax.random.split(key, 6)

    B, h_dim, hidden, out_dim = 8, 32, 64, 2

    # Deterministic synthetic parameters (shapes from nn.Linear(h_dim,64), nn.Linear(64,2)).
    x = jax.random.normal(k_x, (B, h_dim), dtype=jnp.float32)
    w1 = jax.random.normal(k_w1, (h_dim, hidden), dtype=jnp.float32) * 0.1
    b1 = jax.random.normal(k_b1, (1, hidden), dtype=jnp.float32) * 0.1
    w2 = jax.random.normal(k_w2, (hidden, out_dim), dtype=jnp.float32) * 0.1
    b2 = jax.random.normal(k_b2, (1, out_dim), dtype=jnp.float32) * 0.1

    # 1) Small single-block case (module-scale shapes).
    out = jax.block_until_ready(tty_cursor_decoder(x, w1, b1, w2, b2))
    ref = _reference(x, w1, b1, w2, b2)
    assert out.shape == (B, out_dim), out.shape
    assert jnp.allclose(out, ref, atol=1e-4, rtol=1e-4), "mismatch (small f32)"

    # 2) Multi-step tiled path with a ragged last block (exercises the
    #    lane-dense transposed writeback across grid steps).
    B2 = 300
    x2 = jax.random.normal(k_x2, (B2, h_dim), dtype=jnp.float32)
    out2 = jax.block_until_ready(
        tty_cursor_decoder(x2, w1, b1, w2, b2, block_b=128, min_grid_steps=1))
    ref2 = _reference(x2, w1, b1, w2, b2)
    assert out2.shape == (B2, out_dim), out2.shape
    assert jnp.allclose(out2, ref2, atol=1e-4, rtol=1e-4), "mismatch (tiled f32)"

    # 3) bf16 operands go straight to the MXU (no in-kernel upcast of x / w1).
    xb = x2.astype(jnp.bfloat16)
    w1b, b1b = w1.astype(jnp.bfloat16), b1.astype(jnp.bfloat16)
    w2b, b2b = w2.astype(jnp.bfloat16), b2.astype(jnp.bfloat16)
    out3 = jax.block_until_ready(tty_cursor_decoder(xb, w1b, b1b, w2b, b2b))
    ref3 = _reference(xb.astype(jnp.float32), w1b.astype(jnp.float32),
                      b1b.astype(jnp.float32), w2b.astype(jnp.float32),
                      b2b.astype(jnp.float32))
    assert out3.shape == (B2, out_dim), out3.shape
    assert jnp.allclose(out3, ref3, atol=2.0, rtol=5e-2), "mismatch (bf16)"

    # 4) Torch-style 1-D biases and the transposed-output fast path.
    out4 = jax.block_until_ready(
        tty_cursor_decoder(x, w1, b1.reshape(-1), w2, b2.reshape(-1),
                           transposed_output=True))
    assert out4.shape == (out_dim, B), out4.shape
    assert jnp.allclose(out4.T, ref, atol=1e-4, rtol=1e-4), \
        "mismatch (1-D bias / transposed out)"

    print("KERNEL_OK")
</pallas_src>

<mosaic_0001>
module attributes {stable_mosaic.version = 11 : i64} {
  func.func @_cursor_decoder_kernel(%arg0: i32, %arg1: memref<8x32xf32, #tpu.memory_space<vmem>>, %arg2: memref<32x64xf32, #tpu.memory_space<vmem>>, %arg3: memref<1x64xf32, #tpu.memory_space<vmem>>, %arg4: memref<2x64xf32, #tpu.memory_space<vmem>>, %arg5: memref<2x1xf32, #tpu.memory_space<vmem>>, %arg6: memref<2x8xf32, #tpu.memory_space<vmem>>) attributes {dimension_semantics = [#tpu.dimension_semantics<parallel>], iteration_bounds = array<i64: 1>, scalar_prefetch = 0 : i64, scratch_operands = 0 : i64, tpu.core_type = #tpu.core_type<tc>, window_params = [{transform_indices = @transform_0, window_bounds = array<i64: 8, 32>}, {pipeline_mode = #tpu.pipeline_mode<synchronous>, transform_indices = @transform_1, window_bounds = array<i64: 32, 64>}, {pipeline_mode = #tpu.pipeline_mode<synchronous>, transform_indices = @transform_2, window_bounds = array<i64: 1, 64>}, {pipeline_mode = #tpu.pipeline_mode<synchronous>, transform_indices = @transform_3, window_bounds = array<i64: 2, 64>}, {pipeline_mode = #tpu.pipeline_mode<synchronous>, transform_indices = @transform_4, window_bounds = array<i64: 2, 1>}, {transform_indices = @transform_5, window_bounds = array<i64: 2, 8>}]} {
    %c0 = arith.constant 0 : index
    %c0_0 = arith.constant 0 : index
    %0 = vector.load %arg1[%c0, %c0_0] : memref<8x32xf32, #tpu.memory_space<vmem>>, vector<8x32xf32>
    %c0_1 = arith.constant 0 : index
    %c0_2 = arith.constant 0 : index
    %1 = vector.load %arg2[%c0_1, %c0_2] : memref<32x64xf32, #tpu.memory_space<vmem>>, vector<32x64xf32>
    %cst = arith.constant dense<0.000000e+00> : vector<8x64xf32>
    %2 = tpu.matmul %0, %1, %cst {dimension_numbers = #tpu.dot_dimension_numbers<[1], [0], [0], [1], [0, 0, 1, 1], [], []>} : vector<8x32xf32>, vector<32x64xf32>, vector<8x64xf32> -> vector<8x64xf32>
    %c0_3 = arith.constant 0 : index
    %c0_4 = arith.constant 0 : index
    %3 = vector.load %arg3[%c0_3, %c0_4] : memref<1x64xf32, #tpu.memory_space<vmem>>, vector<1x64xf32>
    %4 = vector.broadcast %3 : vector<1x64xf32> to vector<8x64xf32>
    %5 = arith.addf %2, %4 : vector<8x64xf32>
    %6 = arith.negf %5 : vector<8x64xf32>
    %7 = math.exp %6 : vector<8x64xf32>
    %cst_5 = arith.constant 1.000000e+00 : f32
    %8 = vector.broadcast %cst_5 : f32 to vector<8x64xf32>
    %9 = arith.addf %8, %7 : vector<8x64xf32>
    %10 = arith.divf %8, %9 : vector<8x64xf32>
    %11 = arith.mulf %5, %10 : vector<8x64xf32>
    %c0_6 = arith.constant 0 : index
    %c0_7 = arith.constant 0 : index
    %12 = vector.load %arg4[%c0_6, %c0_7] : memref<2x64xf32, #tpu.memory_space<vmem>>, vector<2x64xf32>
    "tpu.trace_start"() <{level = 10 : i32, message = "oh,bh->ob"}> : () -> ()
    %cst_8 = arith.constant dense<0.000000e+00> : vector<2x8xf32>
    %13 = tpu.matmul %12, %11, %cst_8 {dimension_numbers = #tpu.dot_dimension_numbers<[1], [1], [0], [0], [0, 0, 1, 0], [], []>} : vector<2x64xf32>, vector<8x64xf32>, vector<2x8xf32> -> vector<2x8xf32>
    "tpu.trace_stop"() : () -> ()
    %c0_9 = arith.constant 0 : index
    %c0_10 = arith.constant 0 : index
    %14 = vector.load %arg5[%c0_9, %c0_10] : memref<2x1xf32, #tpu.memory_space<vmem>>, vector<2x1xf32>
    %15 = vector.broadcast %14 : vector<2x1xf32> to vector<2x8xf32>
    %16 = arith.addf %13, %15 : vector<2x8xf32>
    %17 = arith.negf %16 : vector<2x8xf32>
    %18 = math.exp %17 : vector<2x8xf32>
    %cst_11 = arith.constant 1.000000e+00 : f32
    %19 = vector.broadcast %cst_11 : f32 to vector<2x8xf32>
    %20 = arith.addf %19, %18 : vector<2x8xf32>
    %21 = arith.divf %19, %20 : vector<2x8xf32>
    %cst_12 = arith.constant 2.550000e+02 : f32
    %22 = vector.broadcast %cst_12 : f32 to vector<2x8xf32>
    %23 = arith.mulf %21, %22 : vector<2x8xf32>
    %c0_13 = arith.constant 0 : index
    %c0_14 = arith.constant 0 : index
    %24 = vector.load %arg6[%c0_13, %c0_14] : memref<2x8xf32, #tpu.memory_space<vmem>>, vector<2x8xf32>
    tpu.vector_store %arg6[%c0_13, %c0_14], %23 {strides = array<i32>} : memref<2x8xf32, #tpu.memory_space<vmem>>, vector<2x8xf32>,
    return
  }
  func.func @transform_0(%arg0: i32) -> (i32, i32) {
    %c0_i32 = arith.constant 0 : i32
    %c0_i32_0 = arith.constant 0 : i32
    return %arg0, %c0_i32 : i32, i32
  }
  func.func @transform_1(%arg0: i32) -> (i32, i32) {
    %c0_i32 = arith.constant 0 : i32
    %c0_i32_0 = arith.constant 0 : i32
    %c0_i32_1 = arith.constant 0 : i32
    return %c0_i32, %c0_i32_0 : i32, i32
  }
  func.func @transform_2(%arg0: i32) -> (i32, i32) {
    %c0_i32 = arith.constant 0 : i32
    %c0_i32_0 = arith.constant 0 : i32
    %c0_i32_1 = arith.constant 0 : i32
    return %c0_i32, %c0_i32_0 : i32, i32
  }
  func.func @transform_3(%arg0: i32) -> (i32, i32) {
    %c0_i32 = arith.constant 0 : i32
    %c0_i32_0 = arith.constant 0 : i32
    %c0_i32_1 = arith.constant 0 : i32
    return %c0_i32, %c0_i32_0 : i32, i32
  }
  func.func @transform_4(%arg0: i32) -> (i32, i32) {
    %c0_i32 = arith.constant 0 : i32
    %c0_i32_0 = arith.constant 0 : i32
    %c0_i32_1 = arith.constant 0 : i32
    return %c0_i32, %c0_i32_0 : i32, i32
  }
  func.func @transform_5(%arg0: i32) -> (i32, i32) {
    %c0_i32 = arith.constant 0 : i32
    %c0_i32_0 = arith.constant 0 : i32
    return %c0_i32, %arg0 : i32, i32
  }
}

</mosaic_0001>

<llo_original>
// kernel: tpu_custom_call.1
$region0: #{tpu_custom_call.1}
  #allocation0 [shape = 'u32[]', space=smem, size = 0x4, offset = 0x4, fixed_abs, tag = 'smem constant byte address 0x4 - core index']
  #allocation1 [shape = 'u32[72,128]{1,0:T(1,128)}', space=vmem, size = 0x9000, scoped, tag = 'internal scratch']
  %s0 = inlined_call_operand.hbm [shape: f32[8,32], index: 0, kind: input, shape index: {}]
  %s1 = inlined_call_operand.hbm [shape: f32[32,64], index: 1, kind: input, shape index: {}]
  %s2 = inlined_call_operand.vmem [shape: f32[1,64], index: 2, kind: input, shape index: {}]
  %s3 = inlined_call_operand.vmem [shape: f32[2,64], index: 3, kind: input, shape index: {}]
  %s4 = inlined_call_operand.vmem [shape: f32[2,1], index: 4, kind: input, shape index: {}]
  %s5 = inlined_call_operand.hbm [shape: f32[2,8], index: 5, kind: output, shape index: {}]
  %s6 = sld [smem:[#allocation0]]
  $region38: #{tpu_custom_call.1} parent=0
    _
  %s8 = ssub.s32 1, %s6
  %s9 = scalar_select 0, %s8, %s6
  $region1: #{tpu_custom_call.1} parent=0
    #allocation2 [shape = 'u8[4096]{0}', space=vmem, size = 0x1000, scoped, tag = 'input window, operand 0, single buffered']
    #allocation3 [shape = 's32[1]{0}', space=sflag, size = 0x4, scoped, tag = 'scoped memory for tpu_custom_call.1']
    #allocation4 [shape = 's32[1]{0}', space=sflag, size = 0x4, scoped, tag = 'scoped memory for tpu_custom_call.1']
    #allocation5 [shape = 'u8[16384]{0}', space=vmem, size = 0x4000, scoped, tag = 'input window, operand 1, single buffered']
    #allocation6 [shape = 's32[1]{0}', space=sflag, size = 0x4, scoped, tag = 'scoped memory for tpu_custom_call.1']
    #allocation7 [shape = 'u8[1024]{0}', space=vmem, size = 0x400, scoped, tag = 'output window, operand 0, single buffered']
    %10 = vsyncpa [#allocation3], 0
    %11 = vsyncpa [#allocation6], 0
    %12 = vsyncpa [#allocation4], 0
    // Predicated region
    $region2: #{tpu_custom_call.1} parent=1 // pred_check
      _
    $region3: #{tpu_custom_call.1} parent=1 // pred_check_branch
      %14 = sbr.rel (0) target = $region5
    $region4: #{tpu_custom_call.1} parent=1 // pred_region
      %16 = vsyncadd [#allocation3], 0
      %s18 = sshll.u32 %s0, 4
      %s19 = int_to_ptr.hbm [resolvable:$true] %s18
      %s20 = sshll.u32 [#allocation2], 4
      %s21 = int_to_ptr.vmem [resolvable:$true] %s20
      %23 = dma.hbm_to_vmem [thread:$0]  %s19, 128, %s21, [#allocation3]
    $region5: #{tpu_custom_call.1} parent=1 // pred_fallthru
      _
    // Predicated region
    $region6: #{tpu_custom_call.1} parent=1 // pred_check
      _
    $region7: #{tpu_custom_call.1} parent=1 // pred_check_branch
      %25 = sbr.rel (0) target = $region9
    $region8: #{tpu_custom_call.1} parent=1 // pred_region
      %27 = vsyncadd [#allocation6], 0
      %s28 = sshll.u32 %s1, 4
      %s29 = int_to_ptr.hbm [resolvable:$true] %s28
      %s30 = sshll.u32 [#allocation5], 4
      %s31 = int_to_ptr.vmem [resolvable:$true] %s30
      %36 = dma.hbm_to_vmem [thread:$0]  %s29, 512, %s31, [#allocation6], 128, 128, 8
    $region9: #{tpu_custom_call.1} parent=1 // pred_fallthru
      _
    // Predicated region
    $region10: #{tpu_custom_call.1} parent=1 // pred_check
      _
    $region11: #{tpu_custom_call.1} parent=1 // pred_check_branch
      %38 = sbr.rel (0) target = $region13
    $region12: #{tpu_custom_call.1} parent=1 // pred_region
      _
    $region13: #{tpu_custom_call.1} parent=1 // pred_fallthru
      _
    // Predicated region
    $region14: #{tpu_custom_call.1} parent=1 // pred_check
      _
    $region15: #{tpu_custom_call.1} parent=1 // pred_check_branch
      %40 = sbr.rel (0) target = $region17
    $region16: #{tpu_custom_call.1} parent=1 // pred_region
      _
    $region17: #{tpu_custom_call.1} parent=1 // pred_fallthru
      _
    // Predicated region
    $region18: #{tpu_custom_call.1} parent=1 // pred_check
      _
    $region19: #{tpu_custom_call.1} parent=1 // pred_check_branch
      %42 = sbr.rel (0) target = $region21
    $region20: #{tpu_custom_call.1} parent=1 // pred_region
      _
    $region21: #{tpu_custom_call.1} parent=1 // pred_fallthru
      _
    // Predicated region
    $region22: #{tpu_custom_call.1} parent=1 // pred_check
      _
    $region23: #{tpu_custom_call.1} parent=1 // pred_check_branch
      %44 = sbr.rel (0) target = $region25
    $region24: #{tpu_custom_call.1} parent=1 // pred_region
      %46 = dma.done [#allocation3], 128
    $region25: #{tpu_custom_call.1} parent=1 // pred_fallthru
      _
    // Predicated region
    $region26: #{tpu_custom_call.1} parent=1 // pred_check
      _
    $region27: #{tpu_custom_call.1} parent=1 // pred_check_branch
      %48 = sbr.rel (0) target = $region29
    $region28: #{tpu_custom_call.1} parent=1 // pred_region
      %50 = dma.done [#allocation6], 512
    $region29: #{tpu_custom_call.1} parent=1 // pred_fallthru
      _
    %v51 = vld [vmem:[#allocation2] sm:$0xff]
    %v52 = vld [vmem:[#allocation5] sm:$0xff]
    %v53 = vld [vmem:[#allocation5 + $0x8] sm:$0xff]
    %v54 = vld [vmem:[#allocation5 + $0x10] sm:$0xff]
    %v55 = vld [vmem:[#allocation5 + $0x18] sm:$0xff]
    %v56 = vld [vmem:[%s2] sm:$0x1]
    %v58 = vperm.slane %v56, 0
    %vm60 = vcmask 261120
    %v62 = vsel %vm60, %v51, 0
    %64 = vmatpush.msra.mxu0 0.0
    %65 = vmatpush.msra.mxu0 0.0
    %66 = vmatpush.msra.mxu0 0.0
    %67 = vmatpush.msra.mxu0 0.0
    %68 = vmatpush.msra.mxu0 0.0
    %69 = vmatpush.msra.mxu0 0.0
    %70 = vmatpush.msra.mxu0 0.0
    %71 = vmatpush.msra.mxu0 0.0
    %72 = vmatpush.msra.mxu0 0.0
    %73 = vmatpush.msra.mxu0 0.0
    %74 = vmatpush.msra.mxu0 0.0
    %75 = vmatpush.msra.mxu0 0.0
    %76 = vmatpush.msra.mxu0 %v55
    %77 = vmatpush.msra.mxu0 %v54
    %78 = vmatpush.msra.mxu0 %v53
    %79 = vmatpush.msra.mxu0 %v52
    %80 = vmatmul.f32.gmra.mxu0 %v62
    %v81 = vpop.f32.mrf.mxu0
    %v82 = vadd.f32 %v58, %v81
    %83 = vdwg.mxu0
    %v84 = vxor.u32 %v82, 2147483648
    %v85 = vmul.f32 %v84, 1.442695
    %v86 = vpow.pop %v85
    %v87 = vadd.f32 %v86, 1.0
    %v88 = vrcp.pop %v87
    %v89 = vmul.f32 %v87, %v88
    %v90 = vsub.f32 1.0, %v89
    %v91 = vmul.f32 %v88, %v90
    %v92 = vadd.f32 %v88, %v91
    %vm93 = vweird.f32 %v87
    %vm94 = vweird.f32 %v88
    %vm95 = vmor %vm93, %vm94
    %v96 = vsel %vm95, %v88, %v92
    %v97 = vand.u32 2147483647, %v87
    %vm98 = vcmp.eq.f32.partialorder %v97, 8.507059e+37
    %v99 = vand.u32 %v87, 2147483648
    %v100 = vor.u32 1.1754944e-38, %v99
    %v101 = vsel %vm98, %v100, %v96
    %v102 = vmul.f32 1.0, %v101
    %v103 = vmul.f32 %v82, %v102
    %v104 = vld [vmem:[%s3] sm:$0x3]
    %v105 = vld [vmem:[%s4] sm:$0x3]
    %107 = vset.pattern.permute.xlu0 0
    %108 = vperm.xlu0 %107, %v105
    %v109 = vpop.permute.xlu0 %108
    %vm111 = vcmask 523264
    %v113 = vsel %vm111, %v104, 0
    %v116 = vsel %vm111, %v103, 0
    %118 = vmatpush.xpose.msra.mxu0 0.0
    %119 = vmatpush.xpose.msra.mxu0 0.0
    %120 = vmatpush.xpose.msra.mxu0 0.0
    %121 = vmatpush.xpose.msra.mxu0 0.0
    %122 = vmatpush.xpose.msra.mxu0 0.0
    %123 = vmatpush.xpose.msra.mxu0 0.0
    %124 = vmatpush.xpose.msra.mxu0 0.0
    %125 = vmatpush.xpose.msra.mxu0 0.0
    %126 = vmatpush.xpose.msra.mxu0 0.0
    %127 = vmatpush.xpose.msra.mxu0 0.0
    %128 = vmatpush.xpose.msra.mxu0 0.0
    %129 = vmatpush.xpose.msra.mxu0 0.0
    %130 = vmatpush.xpose.msra.mxu0 0.0
    %131 = vmatpush.xpose.msra.mxu0 0.0
    %132 = vmatpush.xpose.msra.mxu0 0.0
    %133 = vmatpush.xpose.msra.mxu0 %v116
    %134 = vmatmul.f32.gmra.mxu0 %v113
    %v135 = vpop.f32.mrf.mxu0
    %v136 = vadd.f32 %v109, %v135
    %137 = vdwg.mxu0
    %v138 = vxor.u32 %v136, 2147483648
    %v139 = vmul.f32 %v138, 1.442695
    %v140 = vpow.pop %v139
    %v141 = vadd.f32 %v140, 1.0
    %v142 = vrcp.pop %v141
    %v143 = vmul.f32 %v141, %v142
    %v144 = vsub.f32 1.0, %v143
    %v145 = vmul.f32 %v142, %v144
    %v146 = vadd.f32 %v142, %v145
    %vm147 = vweird.f32 %v141
    %vm148 = vweird.f32 %v142
    %vm149 = vmor %vm147, %vm148
    %v150 = vsel %vm149, %v142, %v146
    %v151 = vand.u32 2147483647, %v141
    %vm152 = vcmp.eq.f32.partialorder %v151, 8.507059e+37
    %v153 = vand.u32 %v141, 2147483648
    %v154 = vor.u32 1.1754944e-38, %v153
    %v155 = vsel %vm152, %v154, %v150
    %v156 = vmul.f32 1.0, %v155
    %v157 = vmul.f32 %v156, 255.0
    %vm158 = vcmask 58368
    %159 = vst.msk [vmem:[#allocation7] sm:$0x3] %vm158, %v157
    // Predicated region
    $region30: #{tpu_custom_call.1} parent=1 // pred_check
      _
    $region31: #{tpu_custom_call.1} parent=1 // pred_check_branch
      %161 = sbr.rel (0) target = $region33
    $region32: #{tpu_custom_call.1} parent=1 // pred_region
      %163 = vsyncadd [#allocation4], 0
      %s165 = sshll.u32 [#allocation7], 4
      %s166 = int_to_ptr.vmem [resolvable:$true] %s165
      %s167 = sshll.u32 %s5, 4
      %s168 = int_to_ptr.hbm [resolvable:$true] %s167
      %170 = dma.vmem_to_hbm [thread:$0]  %s166, 32, %s168, [#allocation4]
    $region33: #{tpu_custom_call.1} parent=1 // pred_fallthru
      _
    // Predicated region
    $region34: #{tpu_custom_call.1} parent=1 // pred_check
      _
    $region35: #{tpu_custom_call.1} parent=1 // pred_check_branch
      %172 = sbr.rel (0) target = $region37
    $region36: #{tpu_custom_call.1} parent=1 // pred_region
      %174 = dma.done [#allocation4], 32
    $region37: #{tpu_custom_call.1} parent=1 // pred_fallthru
      _
    %175 = vsyncpa [#allocation3], 1
    %176 = vsyncpa [#allocation6], 1
    %177 = vsyncpa [#allocation4], 1

</llo_original>
